<compile_context>
chip_gen: v7x
topology: tpu7x:2x2x1
jax: 0.10.0
libtpu: 0.0.40
codegen_flags: <defaults>
</compile_context>

<pallas_src>
import jax
import jax.numpy as jnp
from jax import lax
from jax.experimental import pallas as pl
from jax.experimental.pallas import tpu as pltpu

EMB_DIM = 128                 # fixed by nn.Linear(input_channel, 128)
REG_PAD = 128                 # regression column padded to a full 128-lane block
PACK_W = EMB_DIM + REG_PAD    # 256 packed output columns (one bf16 MXU pass on v6e/v7x)


def classifier_kernel(x_ref, w_ref, b_ref, emb_ref, reg_ref):
    # Cast the x tile to the (bf16) weight dtype in VMEM; a no-op when the
    # activation producer already emits bf16.  The MXU accumulates in f32.
    x = x_ref[...].astype(w_ref.dtype)
    y = jnp.dot(x, w_ref[...], preferred_element_type=jnp.float32)
    y = y + b_ref[...]                     # bias kept in f32

    # Columns [0:128)  -> embedding head (L2-normalized over the feature dim).
    # Column  128      -> regression head (remaining packed lanes are zero).
    emb = y[:, :EMB_DIM]
    sq = jnp.sum(emb * emb, axis=-1, keepdims=True)
    # 1 / max(||v||, 1e-12) == rsqrt(max(||v||^2, 1e-24)); matches F.normalize.
    inv = lax.rsqrt(jnp.maximum(sq, 1e-24))

    emb_ref[...] = (emb * inv).astype(emb_ref.dtype)
    reg_ref[...] = y[:, EMB_DIM:EMB_DIM + 1].astype(reg_ref.dtype)


def pack_classifier_params(w_cls, b_cls, w_emb, b_emb, *, weight_dtype=jnp.bfloat16):
    """Fuse the two Linear heads into one (C, 256) weight / (1, 256) bias.

    Call ONCE next to the parameters (not per forward): hoists the concat/pad
    XLA ops and their HBM traffic out of the hot path.
    Column layout: [0:128) = embedding head, 128 = regression head, rest zero.
    """
    C, E = w_emb.shape
    assert E == EMB_DIM and w_cls.shape == (C, 1)
    w_pack = jnp.concatenate(
        [w_emb, jnp.pad(w_cls, ((0, 0), (0, REG_PAD - 1)))], axis=1
    ).astype(weight_dtype)                                          # (C, 256)
    b_pack = jnp.concatenate(
        [b_emb, jnp.pad(b_cls, ((0, 0), (0, REG_PAD - 1)))], axis=1
    ).astype(jnp.float32)        # bias stays f32 (tiny; keeps the add exact)
    return w_pack, b_pack


def _round_up(x, m):
    return ((x + m - 1) // m) * m


def _choose_tile_m(n_rows, tile_m):
    # 16-row granularity: bf16 sublane packing (also covers the f32 8-row rule).
    tm = max(16, min(_round_up(tile_m, 16), _round_up(n_rows, 16)))
    steps = pl.cdiv(n_rows, tm)
    if steps > 1 and steps % 2 == 1:
        # v7x megacore: an odd step count (e.g. 3 -> 2+1) idles one TensorCore
        # for up to a third of the kernel; re-split so the step count is even.
        tm = max(16, _round_up(pl.cdiv(n_rows, steps + 1), 16))
    return tm


def classifier_forward(x, w_pack, b_pack, *, tile_m=512, out_dtype=jnp.float32):
    """x: (N, C); w_pack/b_pack from pack_classifier_params.

    Returns (regression (N, 1), embedding (N, 128) L2-normalized along dim 1),
    both in out_dtype (f32 by default so the regression scalar keeps full
    precision even on the bf16 activation/weight path).
    """
    N, C = x.shape
    assert w_pack.shape == (C, PACK_W) and b_pack.shape == (1, PACK_W)

    tm = _choose_tile_m(N, tile_m)
    grid = (pl.cdiv(N, tm),)   # partial boundary block handled by Pallas; no host pad

    emb, reg = pl.pallas_call(
        classifier_kernel,
        out_shape=(
            jax.ShapeDtypeStruct((N, EMB_DIM), out_dtype),
            jax.ShapeDtypeStruct((N, 1), out_dtype),
        ),
        grid_spec=pltpu.PrefetchScalarGridSpec(
            num_scalar_prefetch=0,
            grid=grid,
            in_specs=[
                pl.BlockSpec((tm, C), lambda i: (i, 0)),       # x tile (streamed)
                # Constant index_maps: packed weights/bias stay resident across
                # grid steps (Pallas skips re-fetching an unchanged block); with
                # ~4 MiB total working set there is no need to force
                # single-buffering via pl.Buffered(1).
                pl.BlockSpec((C, PACK_W), lambda i: (0, 0)),   # packed weights (bf16)
                pl.BlockSpec((1, PACK_W), lambda i: (0, 0)),   # packed bias (f32)
            ],
            out_specs=[
                pl.BlockSpec((tm, EMB_DIM), lambda i: (i, 0)),  # lane-dense embedding
                pl.BlockSpec((tm, 1), lambda i: (i, 0)),        # tiny regression column
            ],
        ),
        compiler_params=pltpu.CompilerParams(
            dimension_semantics=("parallel",),   # shard grid steps across TCs (v7x)
        ),
        # TODO(synk): if xprof shows exposed DMA on the x stream on v7x (HBM is
        # shared by 2 TCs), try pipeline_mode=pl.Buffered(3) on the x BlockSpec.
    )(x, w_pack, b_pack)

    return reg, emb


if __name__ == "__main__":
    # Small shapes consistent with the module's forward (x is (batch, input_channel)).
    # N is deliberately NOT a tile multiple so the partial-boundary-block path runs.
    N = 100          # batch
    C = 256          # input_channel (module default is 1280; kept small here)
    E = EMB_DIM      # 128, fixed by nn.Linear(C, 128)

    key = jax.random.PRNGKey(0)
    kx, kwc, kbc, kwe, kbe = jax.random.split(key, 5)

    # Activations in bf16: the intended production path has the upstream layer
    # emit bf16 directly, halving the HBM x stream this kernel is bound on.
    x = jax.random.normal(kx, (N, C), dtype=jnp.float32).astype(jnp.bfloat16)

    # Linear weights stored pre-transposed: (out, in) -> (in, out).
    w_cls = jax.random.normal(kwc, (C, 1), dtype=jnp.float32) * 0.02
    b_cls = jax.random.normal(kbc, (1, 1), dtype=jnp.float32) * 0.02
    w_emb = jax.random.normal(kwe, (C, E), dtype=jnp.float32) * 0.02
    b_emb = jax.random.normal(kbe, (1, E), dtype=jnp.float32) * 0.02

    # Pack once (hoisted out of the per-forward path).
    w_pack, b_pack = pack_classifier_params(w_cls, b_cls, w_emb, b_emb)

    reg, emb = classifier_forward(x, w_pack, b_pack)
    # Also exercise the multi-step grid (even step count + partial last block).
    reg2, emb2 = classifier_forward(x, w_pack, b_pack, tile_m=32)
    jax.block_until_ready((reg, emb, reg2, emb2))

    # Reference in plain JAX with f32 weights (same semantics as the PyTorch forward).
    xf = x.astype(jnp.float32)
    reg_ref = xf @ w_cls + b_cls
    emb_ref = xf @ w_emb + b_emb
    emb_ref = emb_ref / jnp.maximum(
        jnp.linalg.norm(emb_ref, axis=1, keepdims=True), 1e-12)

    assert reg.shape == (N, 1) and emb.shape == (N, E)
    # bf16 weights/activations vs the f32 reference: accept ~1e-2 tolerance.
    assert jnp.allclose(reg, reg_ref, atol=1.5e-2, rtol=1.5e-2), \
        float(jnp.max(jnp.abs(reg - reg_ref)))
    assert jnp.allclose(emb, emb_ref, atol=1.5e-2, rtol=1.5e-2), \
        float(jnp.max(jnp.abs(emb - emb_ref)))
    # Tiling must not change the math.
    assert jnp.allclose(reg2, reg, atol=1e-6) and jnp.allclose(emb2, emb, atol=1e-6)
    # Embedding rows are unit-norm.
    assert jnp.allclose(jnp.linalg.norm(emb, axis=1), 1.0, atol=1e-3)

    print("KERNEL_OK")
</pallas_src>

<mosaic_0001>
module attributes {stable_mosaic.version = 11 : i64} {
  func.func @classifier_kernel(%arg0: i32, %arg1: memref<112x256xbf16, #tpu.memory_space<vmem>>, %arg2: memref<256x256xbf16, #tpu.memory_space<vmem>>, %arg3: memref<1x256xf32, #tpu.memory_space<vmem>>, %arg4: memref<112x128xf32, #tpu.memory_space<vmem>>, %arg5: memref<112x1xf32, #tpu.memory_space<vmem>>) attributes {dimension_semantics = [#tpu.dimension_semantics<parallel>], iteration_bounds = array<i64: 1>, scalar_prefetch = 0 : i64, scratch_operands = 0 : i64, tpu.core_type = #tpu.core_type<tc>, window_params = [{transform_indices = @transform_0, window_bounds = array<i64: 112, 256>}, {pipeline_mode = #tpu.pipeline_mode<synchronous>, transform_indices = @transform_1, window_bounds = array<i64: 256, 256>}, {pipeline_mode = #tpu.pipeline_mode<synchronous>, transform_indices = @transform_2, window_bounds = array<i64: 1, 256>}, {transform_indices = @transform_3, window_bounds = array<i64: 112, 128>}, {transform_indices = @transform_4, window_bounds = array<i64: 112, 1>}]} {
    %c0 = arith.constant 0 : index
    %c0_0 = arith.constant 0 : index
    %0 = vector.load %arg1[%c0, %c0_0] : memref<112x256xbf16, #tpu.memory_space<vmem>>, vector<112x256xbf16>
    %c0_1 = arith.constant 0 : index
    %c0_2 = arith.constant 0 : index
    %1 = vector.load %arg2[%c0_1, %c0_2] : memref<256x256xbf16, #tpu.memory_space<vmem>>, vector<256x256xbf16>
    %cst = arith.constant dense<0.000000e+00> : vector<112x256xf32>
    %2 = tpu.matmul %0, %1, %cst {dimension_numbers = #tpu.dot_dimension_numbers<[1], [0], [0], [1], [0, 0, 1, 1], [], []>} : vector<112x256xbf16>, vector<256x256xbf16>, vector<112x256xf32> -> vector<112x256xf32>
    %c0_3 = arith.constant 0 : index
    %c0_4 = arith.constant 0 : index
    %3 = vector.load %arg3[%c0_3, %c0_4] : memref<1x256xf32, #tpu.memory_space<vmem>>, vector<1x256xf32>
    %4 = vector.broadcast %3 : vector<1x256xf32> to vector<112x256xf32>
    %5 = arith.addf %2, %4 : vector<112x256xf32>
    %6 = vector.extract_strided_slice %5 {offsets = [0, 0], sizes = [112, 128], strides = [1, 1]} : vector<112x256xf32> to vector<112x128xf32>
    %7 = arith.mulf %6, %6 : vector<112x128xf32>
    %cst_5 = arith.constant dense<0.000000e+00> : vector<112xf32>
    %8 = vector.multi_reduction <add>, %7, %cst_5 [1] : vector<112x128xf32> to vector<112xf32>
    %9 = vector.shape_cast %8 : vector<112xf32> to vector<112x1xf32>
    %cst_6 = arith.constant 1.000000e-24 : f32
    %10 = vector.broadcast %cst_6 : f32 to vector<112x1xf32>
    %11 = arith.maximumf %9, %10 : vector<112x1xf32>
    %12 = math.rsqrt %11 : vector<112x1xf32>
    %13 = vector.broadcast %12 : vector<112x1xf32> to vector<112x128xf32>
    %14 = arith.mulf %6, %13 : vector<112x128xf32>
    %c0_7 = arith.constant 0 : index
    %c0_8 = arith.constant 0 : index
    %15 = vector.load %arg4[%c0_7, %c0_8] : memref<112x128xf32, #tpu.memory_space<vmem>>, vector<112x128xf32>
    tpu.vector_store %arg4[%c0_7, %c0_8], %14 {strides = array<i32>} : memref<112x128xf32, #tpu.memory_space<vmem>>, vector<112x128xf32>,
    %16 = vector.extract_strided_slice %5 {offsets = [0, 128], sizes = [112, 1], strides = [1, 1]} : vector<112x256xf32> to vector<112x1xf32>
    %c0_9 = arith.constant 0 : index
    %c0_10 = arith.constant 0 : index
    %17 = vector.load %arg5[%c0_9, %c0_10] : memref<112x1xf32, #tpu.memory_space<vmem>>, vector<112x1xf32>
    tpu.vector_store %arg5[%c0_9, %c0_10], %16 {strides = array<i32>} : memref<112x1xf32, #tpu.memory_space<vmem>>, vector<112x1xf32>,
    return
  }
  func.func @transform_0(%arg0: i32) -> (i32, i32) {
    %c0_i32 = arith.constant 0 : i32
    %c0_i32_0 = arith.constant 0 : i32
    return %arg0, %c0_i32 : i32, i32
  }
  func.func @transform_1(%arg0: i32) -> (i32, i32) {
    %c0_i32 = arith.constant 0 : i32
    %c0_i32_0 = arith.constant 0 : i32
    %c0_i32_1 = arith.constant 0 : i32
    return %c0_i32, %c0_i32_0 : i32, i32
  }
  func.func @transform_2(%arg0: i32) -> (i32, i32) {
    %c0_i32 = arith.constant 0 : i32
    %c0_i32_0 = arith.constant 0 : i32
    %c0_i32_1 = arith.constant 0 : i32
    return %c0_i32, %c0_i32_0 : i32, i32
  }
  func.func @transform_3(%arg0: i32) -> (i32, i32) {
    %c0_i32 = arith.constant 0 : i32
    %c0_i32_0 = arith.constant 0 : i32
    return %arg0, %c0_i32 : i32, i32
  }
  func.func @transform_4(%arg0: i32) -> (i32, i32) {
    %c0_i32 = arith.constant 0 : i32
    %c0_i32_0 = arith.constant 0 : i32
    return %arg0, %c0_i32 : i32, i32
  }
}

</mosaic_0001>

<llo_original>
// kernel: tpu_custom_call.1
$region0: #{tpu_custom_call.1}
  #allocation0 [shape = 'u32[]', space=smem, size = 0x4, offset = 0x4, fixed_abs, tag = 'smem constant byte address 0x4 - core index']
  #allocation1 [shape = 'u32[144,128]{1,0:T(1,128)}', space=vmem, size = 0x12000, scoped, tag = 'internal scratch']
  %s0 = inlined_call_operand.hbm [shape: bf16[100,256], index: 0, kind: input, shape index: {}]
  %s1 = inlined_call_operand.hbm [shape: bf16[256,256], index: 1, kind: input, shape index: {}]
  %s2 = inlined_call_operand.vmem [shape: f32[1,256], index: 2, kind: input, shape index: {}]
  %s3 = inlined_call_operand.hbm [shape: f32[100,128], index: 3, kind: output, shape index: {0}]
  %s4 = inlined_call_operand.vmem [shape: f32[100,1], index: 4, kind: output, shape index: {1}]
  %5 = xla_tuple %s3, %s4
  %s6 = sld [smem:[#allocation0]]
  $region72: #{tpu_custom_call.1} parent=0
    _
  %s8 = ssub.s32 1, %s6
  %s9 = scalar_select 0, %s8, %s6
  $region1: #{tpu_custom_call.1} parent=0
    #allocation2 [shape = 'u8[57344]{0}', space=vmem, size = 0xe000, scoped, tag = 'input window, operand 0, single buffered']
    #allocation3 [shape = 's32[1]{0}', space=sflag, size = 0x4, scoped, tag = 'scoped memory for tpu_custom_call.1']
    #allocation4 [shape = 's32[1]{0}', space=sflag, size = 0x4, scoped, tag = 'scoped memory for tpu_custom_call.1']
    #allocation5 [shape = 'u8[131072]{0}', space=vmem, size = 0x20000, scoped, tag = 'input window, operand 1, single buffered']
    #allocation6 [shape = 's32[1]{0}', space=sflag, size = 0x4, scoped, tag = 'scoped memory for tpu_custom_call.1']
    #allocation7 [shape = 'u8[57344]{0}', space=vmem, size = 0xe000, scoped, tag = 'output window, operand 0, single buffered']
    #allocation8 [shape = 'u8[57344]{0}', space=vmem, size = 0xe000, scoped, tag = 'output window, operand 1, single buffered']
    %10 = vsyncpa [#allocation3], 0
    %11 = vsyncpa [#allocation6], 0
    %12 = vsyncpa [#allocation4], 0
    // Predicated region
    $region2: #{tpu_custom_call.1} parent=1 // pred_check
      _
    $region3: #{tpu_custom_call.1} parent=1 // pred_check_branch
      %14 = sbr.rel (0) target = $region5
    $region4: #{tpu_custom_call.1} parent=1 // pred_region
      %s16 = ssub.s32 1792, 1664
      %17 = vsyncadd [#allocation3], %s16
      %s18 = sshll.u32 [#allocation2], 4
      %s19 = int_to_ptr.vmem [resolvable:$true] %s18
      %24 = dma.hbm_to_vmem [thread:$0]  %s0, 1664, %s19, [#allocation3], 128, 128, 8
    $region5: #{tpu_custom_call.1} parent=1 // pred_fallthru
      _
    // Predicated region
    $region6: #{tpu_custom_call.1} parent=1 // pred_check
      _
    $region7: #{tpu_custom_call.1} parent=1 // pred_check_branch
      %26 = sbr.rel (0) target = $region9
    $region8: #{tpu_custom_call.1} parent=1 // pred_region
      %s28 = ssub.s32 4096, 4096
      %29 = vsyncadd [#allocation6], %s28
      %s30 = sshll.u32 [#allocation5], 4
      %s31 = int_to_ptr.vmem [resolvable:$true] %s30
      %36 = dma.hbm_to_vmem [thread:$0]  %s1, 4096, %s31, [#allocation6], 128, 128, 8
    $region9: #{tpu_custom_call.1} parent=1 // pred_fallthru
      _
    // Predicated region
    $region10: #{tpu_custom_call.1} parent=1 // pred_check
      _
    $region11: #{tpu_custom_call.1} parent=1 // pred_check_branch
      %38 = sbr.rel (0) target = $region13
    $region12: #{tpu_custom_call.1} parent=1 // pred_region
      _
    $region13: #{tpu_custom_call.1} parent=1 // pred_fallthru
      _
    // Predicated region
    $region14: #{tpu_custom_call.1} parent=1 // pred_check
      _
    $region15: #{tpu_custom_call.1} parent=1 // pred_check_branch
      %40 = sbr.rel (0) target = $region17
    $region16: #{tpu_custom_call.1} parent=1 // pred_region
      %41 = dma.done [#allocation3], 1792
    $region17: #{tpu_custom_call.1} parent=1 // pred_fallthru
      _
    // Predicated region
    $region18: #{tpu_custom_call.1} parent=1 // pred_check
      _
    $region19: #{tpu_custom_call.1} parent=1 // pred_check_branch
      %43 = sbr.rel (0) target = $region21
    $region20: #{tpu_custom_call.1} parent=1 // pred_region
      %44 = dma.done [#allocation6], 4096
    $region21: #{tpu_custom_call.1} parent=1 // pred_fallthru
      _
    %v45 = vld [vmem:[#allocation2] sm:$0xff]
    %v46 = vld [vmem:[#allocation2 + $0x8] sm:$0xff]
    %v47 = vld [vmem:[#allocation2 + $0x10] sm:$0xff]
    %v48 = vld [vmem:[#allocation2 + $0x18] sm:$0xff]
    %v49 = vld [vmem:[#allocation2 + $0x20] sm:$0xff]
    %v50 = vld [vmem:[#allocation2 + $0x28] sm:$0xff]
    %v51 = vld [vmem:[#allocation2 + $0x30] sm:$0xff]
    %v52 = vld [vmem:[#allocation2 + $0x38] sm:$0xff]
    %v53 = vld [vmem:[#allocation2 + $0x40] sm:$0xff]
    %v54 = vld [vmem:[#allocation2 + $0x48] sm:$0xff]
    %v55 = vld [vmem:[#allocation2 + $0x50] sm:$0xff]
    %v56 = vld [vmem:[#allocation2 + $0x58] sm:$0xff]
    %v57 = vld [vmem:[#allocation2 + $0x60] sm:$0xff]
    %v58 = vld [vmem:[#allocation2 + $0x68] sm:$0xff]
    %v59 = vld [vmem:[#allocation5] sm:$0xff]
    %v60 = vld [vmem:[#allocation5 + $0x8] sm:$0xff]
    %v61 = vld [vmem:[#allocation5 + $0x10] sm:$0xff]
    %v62 = vld [vmem:[#allocation5 + $0x18] sm:$0xff]
    %v63 = vld [vmem:[#allocation5 + $0x20] sm:$0xff]
    %v64 = vld [vmem:[#allocation5 + $0x28] sm:$0xff]
    %v65 = vld [vmem:[#allocation5 + $0x30] sm:$0xff]
    %v66 = vld [vmem:[#allocation5 + $0x38] sm:$0xff]
    %v67 = vld [vmem:[#allocation5 + $0x40] sm:$0xff]
    %v68 = vld [vmem:[#allocation5 + $0x48] sm:$0xff]
    %v69 = vld [vmem:[#allocation5 + $0x50] sm:$0xff]
    %v70 = vld [vmem:[#allocation5 + $0x58] sm:$0xff]
    %v71 = vld [vmem:[#allocation5 + $0x60] sm:$0xff]
    %v72 = vld [vmem:[#allocation5 + $0x68] sm:$0xff]
    %v73 = vld [vmem:[#allocation5 + $0x70] sm:$0xff]
    %v74 = vld [vmem:[#allocation5 + $0x78] sm:$0xff]
    %v75 = vld [vmem:[#allocation5 + $0x80] sm:$0xff]
    %v76 = vld [vmem:[#allocation5 + $0x88] sm:$0xff]
    %v77 = vld [vmem:[#allocation5 + $0x90] sm:$0xff]
    %v78 = vld [vmem:[#allocation5 + $0x98] sm:$0xff]
    %v79 = vld [vmem:[#allocation5 + $0xa0] sm:$0xff]
    %v80 = vld [vmem:[#allocation5 + $0xa8] sm:$0xff]
    %v81 = vld [vmem:[#allocation5 + $0xb0] sm:$0xff]
    %v82 = vld [vmem:[#allocation5 + $0xb8] sm:$0xff]
    %v83 = vld [vmem:[#allocation5 + $0xc0] sm:$0xff]
    %v84 = vld [vmem:[#allocation5 + $0xc8] sm:$0xff]
    %v85 = vld [vmem:[#allocation5 + $0xd0] sm:$0xff]
    %v86 = vld [vmem:[#allocation5 + $0xd8] sm:$0xff]
    %v87 = vld [vmem:[#allocation5 + $0xe0] sm:$0xff]
    %v88 = vld [vmem:[#allocation5 + $0xe8] sm:$0xff]
    %v89 = vld [vmem:[#allocation5 + $0xf0] sm:$0xff]
    %v90 = vld [vmem:[#allocation5 + $0xf8] sm:$0xff]
    %v91 = vld [vmem:[%s2] sm:$0x3]
    %v93 = vlaneseq
    %v94 = vshrl.u32 %v93, 7
    %v95 = vsub.s32 0, %v94
    %v96 = vrot.slane %v91, %v95
    %v97 = vlaneseq
    %v98 = vshrl.u32 %v97, 7
    %v99 = vsub.s32 1, %v98
    %v100 = vrot.slane %v91, %v99
    %v117 = vunpack.c.l.b16 %v45
    %v118 = vunpack.c.h.b16 %v45
    %v119 = vunpack.c.l.b16 %v46
    %v120 = vunpack.c.h.b16 %v46
    %v121 = vunpack.c.l.b16 %v47
    %v122 = vunpack.c.h.b16 %v47
    %v123 = vunpack.c.l.b16 %v48
    %v124 = vunpack.c.h.b16 %v48
    %v125 = vunpack.c.l.b16 %v49
    %v126 = vunpack.c.h.b16 %v49
    %v127 = vunpack.c.l.b16 %v50
    %v128 = vunpack.c.h.b16 %v50
    %v129 = vunpack.c.l.b16 %v51
    %v130 = vunpack.c.h.b16 %v51
    %v131 = vunpack.c.l.b16 %v52
    %v132 = vunpack.c.h.b16 %v52
    %v133 = vunpack.c.l.b16 %v53
    %v134 = vunpack.c.h.b16 %v53
    %v135 = vunpack.c.l.b16 %v54
    %v136 = vunpack.c.h.b16 %v54
    %v137 = vunpack.c.l.b16 %v55
    %v138 = vunpack.c.h.b16 %v55
    %v139 = vunpack.c.l.b16 %v56
    %v140 = vunpack.c.h.b16 %v56
    %v141 = vunpack.c.l.b16 %v57
    %v142 = vunpack.c.h.b16 %v57
    %v143 = vunpack.c.l.b16 %v58
    %v144 = vunpack.c.h.b16 %v58
    %v145 = vpack.c.b16 %v119, %v117
    %v146 = vpack.c.b16 %v120, %v118
    %v147 = vpack.c.b16 %v123, %v121
    %v148 = vpack.c.b16 %v124, %v122
    %v149 = vpack.c.b16 %v127, %v125
    %v150 = vpack.c.b16 %v128, %v126
    %v151 = vpack.c.b16 %v131, %v129
    %v152 = vpack.c.b16 %v132, %v130
    %v153 = vpack.c.b16 %v135, %v133
    %v154 = vpack.c.b16 %v136, %v134
    %v155 = vpack.c.b16 %v139, %v137
    %v156 = vpack.c.b16 %v140, %v138
    %v157 = vpack.c.b16 %v143, %v141
    %v158 = vpack.c.b16 %v144, %v142
    %v205 = vunpack.c.l.b16 %v59
    %v206 = vunpack.c.h.b16 %v59
    %v207 = vunpack.c.l.b16 %v60
    %v208 = vunpack.c.h.b16 %v60
    %v209 = vunpack.c.l.b16 %v61
    %v210 = vunpack.c.h.b16 %v61
    %v211 = vunpack.c.l.b16 %v62
    %v212 = vunpack.c.h.b16 %v62
    %v213 = vunpack.c.l.b16 %v63
    %v214 = vunpack.c.h.b16 %v63
    %v215 = vunpack.c.l.b16 %v64
    %v216 = vunpack.c.h.b16 %v64
    %v217 = vunpack.c.l.b16 %v65
    %v218 = vunpack.c.h.b16 %v65
    %v219 = vunpack.c.l.b16 %v66
    %v220 = vunpack.c.h.b16 %v66
    %v221 = vunpack.c.l.b16 %v67
    %v222 = vunpack.c.h.b16 %v67
    %v223 = vunpack.c.l.b16 %v68
    %v224 = vunpack.c.h.b16 %v68
    %v225 = vunpack.c.l.b16 %v69
    %v226 = vunpack.c.h.b16 %v69
    %v227 = vunpack.c.l.b16 %v70
    %v228 = vunpack.c.h.b16 %v70
    %v229 = vunpack.c.l.b16 %v71
    %v230 = vunpack.c.h.b16 %v71
    %v231 = vunpack.c.l.b16 %v72
    %v232 = vunpack.c.h.b16 %v72
    %v233 = vunpack.c.l.b16 %v73
    %v234 = vunpack.c.h.b16 %v73
    %v235 = vunpack.c.l.b16 %v74
    %v236 = vunpack.c.h.b16 %v74
    %v237 = vunpack.c.l.b16 %v75
    %v238 = vunpack.c.h.b16 %v75
    %v239 = vunpack.c.l.b16 %v76
    %v240 = vunpack.c.h.b16 %v76
    %v241 = vunpack.c.l.b16 %v77
    %v242 = vunpack.c.h.b16 %v77
    %v243 = vunpack.c.l.b16 %v78
    %v244 = vunpack.c.h.b16 %v78
    %v245 = vunpack.c.l.b16 %v79
    %v246 = vunpack.c.h.b16 %v79
    %v247 = vunpack.c.l.b16 %v80
    %v248 = vunpack.c.h.b16 %v80
    %v249 = vunpack.c.l.b16 %v81
    %v250 = vunpack.c.h.b16 %v81
    %v251 = vunpack.c.l.b16 %v82
    %v252 = vunpack.c.h.b16 %v82
    %v253 = vunpack.c.l.b16 %v83
    %v254 = vunpack.c.h.b16 %v83
    %v255 = vunpack.c.l.b16 %v84
    %v256 = vunpack.c.h.b16 %v84
    %v257 = vunpack.c.l.b16 %v85
    %v258 = vunpack.c.h.b16 %v85
    %v259 = vunpack.c.l.b16 %v86
    %v260 = vunpack.c.h.b16 %v86
    %v261 = vunpack.c.l.b16 %v87
    %v262 = vunpack.c.h.b16 %v87
    %v263 = vunpack.c.l.b16 %v88
    %v264 = vunpack.c.h.b16 %v88
    %v265 = vunpack.c.l.b16 %v89
    %v266 = vunpack.c.h.b16 %v89
    %v267 = vunpack.c.l.b16 %v90
    %v268 = vunpack.c.h.b16 %v90
    %v269 = vpack.c.b16 %v207, %v205
    %v270 = vpack.c.b16 %v208, %v206
    %v271 = vpack.c.b16 %v211, %v209
    %v272 = vpack.c.b16 %v212, %v210
    %v273 = vpack.c.b16 %v215, %v213
    %v274 = vpack.c.b16 %v216, %v214
    %v275 = vpack.c.b16 %v219, %v217
    %v276 = vpack.c.b16 %v220, %v218
    %v277 = vpack.c.b16 %v223, %v221
    %v278 = vpack.c.b16 %v224, %v222
    %v279 = vpack.c.b16 %v227, %v225
    %v280 = vpack.c.b16 %v228, %v226
    %v281 = vpack.c.b16 %v231, %v229
    %v282 = vpack.c.b16 %v232, %v230
    %v283 = vpack.c.b16 %v235, %v233
    %v284 = vpack.c.b16 %v236, %v234
    %v285 = vpack.c.b16 %v239, %v237
    %v286 = vpack.c.b16 %v240, %v238
    %v287 = vpack.c.b16 %v243, %v241
    %v288 = vpack.c.b16 %v244, %v242
    %v289 = vpack.c.b16 %v247, %v245
    %v290 = vpack.c.b16 %v248, %v246
    %v291 = vpack.c.b16 %v251, %v249
    %v292 = vpack.c.b16 %v252, %v250
    %v293 = vpack.c.b16 %v255, %v253
    %v294 = vpack.c.b16 %v256, %v254
    %v295 = vpack.c.b16 %v259, %v257
    %v296 = vpack.c.b16 %v260, %v258
    %v297 = vpack.c.b16 %v263, %v261
    %v298 = vpack.c.b16 %v264, %v262
    %v299 = vpack.c.b16 %v267, %v265
    %v300 = vpack.c.b16 %v268, %v266
    %333 = vmatprep.subr.bf16.mxu0 %v270
    %334 = vmatpush1.bf16.msra.mxu0 %v269
    %335 = vmatprep.subr.bf16.mxu0 %v272
    %336 = vmatpush1.bf16.msra.mxu0 %v271
    %337 = vmatprep.subr.bf16.mxu0 %v274
    %338 = vmatpush1.bf16.msra.mxu0 %v273
    %339 = vmatprep.subr.bf16.mxu0 %v276
    %340 = vmatpush1.bf16.msra.mxu0 %v275
    %341 = vmatprep.subr.bf16.mxu0 %v278
    %342 = vmatpush1.bf16.msra.mxu0 %v277
    %343 = vmatprep.subr.bf16.mxu0 %v280
    %344 = vmatpush1.bf16.msra.mxu0 %v279
    %345 = vmatprep.subr.bf16.mxu0 %v282
    %346 = vmatpush1.bf16.msra.mxu0 %v281
    %347 = vmatprep.subr.bf16.mxu0 %v284
    %348 = vmatpush1.bf16.msra.mxu0 %v283
    %349 = vmatprep.subr.bf16.mxu0 %v286
    %350 = vmatpush1.bf16.msra.mxu0 %v285
    %351 = vmatprep.subr.bf16.mxu0 %v288
    %352 = vmatpush1.bf16.msra.mxu0 %v287
    %353 = vmatprep.subr.bf16.mxu0 %v290
    %354 = vmatpush1.bf16.msra.mxu0 %v289
    %355 = vmatprep.subr.bf16.mxu0 %v292
    %356 = vmatpush1.bf16.msra.mxu0 %v291
    %357 = vmatprep.subr.bf16.mxu0 %v294
    %358 = vmatpush1.bf16.msra.mxu0 %v293
    %359 = vmatprep.subr.bf16.mxu0 %v296
    %360 = vmatpush1.bf16.msra.mxu0 %v295
    %361 = vmatprep.subr.bf16.mxu0 %v298
    %362 = vmatpush1.bf16.msra.mxu0 %v297
    %363 = vmatprep.subr.bf16.mxu0 %v300
    %364 = vmatpush1.bf16.msra.mxu0 %v299
    %365 = vmatprep.mubr.bf16.mxu0 %v146
    %366 = vmatmul.mubr.bf16.gmra.mrb[0].mxu0 %v145
    %v367 = vpop.f32.mrb[0].mxu0
    %v368 = vadd.f32 %v96, %v367
    %v369 = vpop.f32.mrb[0].mxu0
    %v370 = vadd.f32 %v100, %v369
    %v371 = vpop.f32.mrb[0].mxu0
    %v372 = vadd.f32 %v96, %v371
    %v373 = vpop.f32.mrb[0].mxu0
    %v374 = vadd.f32 %v100, %v373
    %375 = vmatprep.mubr.bf16.mxu0 %v148
    %376 = vmatmul.mubr.bf16.gmra.mrb[0].mxu0 %v147
    %v377 = vpop.f32.mrb[0].mxu0
    %v378 = vadd.f32 %v96, %v377
    %v379 = vpop.f32.mrb[0].mxu0
    %v380 = vadd.f32 %v100, %v379
    %v381 = vpop.f32.mrb[0].mxu0
    %v382 = vadd.f32 %v96, %v381
    %v383 = vpop.f32.mrb[0].mxu0
    %v384 = vadd.f32 %v100, %v383
    %385 = vmatprep.mubr.bf16.mxu0 %v150
    %386 = vmatmul.mubr.bf16.gmra.mrb[0].mxu0 %v149
    %v387 = vpop.f32.mrb[0].mxu0
    %v388 = vadd.f32 %v96, %v387
    %v389 = vpop.f32.mrb[0].mxu0
    %v390 = vadd.f32 %v100, %v389
    %v391 = vpop.f32.mrb[0].mxu0
    %v392 = vadd.f32 %v96, %v391
    %v393 = vpop.f32.mrb[0].mxu0
    %v394 = vadd.f32 %v100, %v393
    %395 = vmatprep.mubr.bf16.mxu0 %v152
    %396 = vmatmul.mubr.bf16.gmra.mrb[0].mxu0 %v151
    %v397 = vpop.f32.mrb[0].mxu0
    %v398 = vadd.f32 %v96, %v397
    %v399 = vpop.f32.mrb[0].mxu0
    %v400 = vadd.f32 %v100, %v399
    %v401 = vpop.f32.mrb[0].mxu0
    %v402 = vadd.f32 %v96, %v401
    %v403 = vpop.f32.mrb[0].mxu0
    %v404 = vadd.f32 %v100, %v403
    %405 = vmatprep.mubr.bf16.mxu0 %v154
    %406 = vmatmul.mubr.bf16.gmra.mrb[0].mxu0 %v153
    %v407 = vpop.f32.mrb[0].mxu0
    %v408 = vadd.f32 %v96, %v407
    %v409 = vpop.f32.mrb[0].mxu0
    %v410 = vadd.f32 %v100, %v409
    %v411 = vpop.f32.mrb[0].mxu0
    %v412 = vadd.f32 %v96, %v411
    %v413 = vpop.f32.mrb[0].mxu0
    %v414 = vadd.f32 %v100, %v413
    %415 = vmatprep.mubr.bf16.mxu0 %v156
    %416 = vmatmul.mubr.bf16.gmra.mrb[0].mxu0 %v155
    %v417 = vpop.f32.mrb[0].mxu0
    %v418 = vadd.f32 %v96, %v417
    %v419 = vpop.f32.mrb[0].mxu0
    %v420 = vadd.f32 %v100, %v419
    %v421 = vpop.f32.mrb[0].mxu0
    %v422 = vadd.f32 %v96, %v421
    %v423 = vpop.f32.mrb[0].mxu0
    %v424 = vadd.f32 %v100, %v423
    %425 = vmatprep.mubr.bf16.mxu0 %v158
    %426 = vmatmul.mubr.bf16.gmra.mrb[0].mxu0 %v157
    %v427 = vpop.f32.mrb[0].mxu0
    %v428 = vadd.f32 %v96, %v427
    %v429 = vpop.f32.mrb[0].mxu0
    %v430 = vadd.f32 %v100, %v429
    %v431 = vpop.f32.mrb[0].mxu0
    %v432 = vadd.f32 %v96, %v431
    %v433 = vpop.f32.mrb[0].mxu0
    %v434 = vadd.f32 %v100, %v433
    %435 = vdwg.mxu0
    %v436 = vmul.f32 %v368, %v368
    %v437 = vmul.f32 %v372, %v372
    %v438 = vmul.f32 %v378, %v378
    %v439 = vmul.f32 %v382, %v382
    %v440 = vmul.f32 %v388, %v388
    %v441 = vmul.f32 %v392, %v392
    %v442 = vmul.f32 %v398, %v398
    %v443 = vmul.f32 %v402, %v402
    %v444 = vmul.f32 %v408, %v408
    %v445 = vmul.f32 %v412, %v412
    %v446 = vmul.f32 %v418, %v418
    %v447 = vmul.f32 %v422, %v422
    %v448 = vmul.f32 %v428, %v428
    %v449 = vmul.f32 %v432, %v432
    %450 = vadd.xlane.f32.xlu0 %v436
    %v451 = vpop.xlane.xlu0 %450
    %452 = vadd.xlane.f32.xlu0 %v437
    %v453 = vpop.xlane.xlu0 %452
    %454 = vadd.xlane.f32.xlu0 %v438
    %v455 = vpop.xlane.xlu0 %454
    %456 = vadd.xlane.f32.xlu0 %v439
    %v457 = vpop.xlane.xlu0 %456
    %458 = vadd.xlane.f32.xlu0 %v440
    %v459 = vpop.xlane.xlu0 %458
    %460 = vadd.xlane.f32.xlu0 %v441
    %v461 = vpop.xlane.xlu0 %460
    %462 = vadd.xlane.f32.xlu0 %v442
    %v463 = vpop.xlane.xlu0 %462
    %464 = vadd.xlane.f32.xlu0 %v443
    %v465 = vpop.xlane.xlu0 %464
    %466 = vadd.xlane.f32.xlu0 %v444
    %v467 = vpop.xlane.xlu0 %466
    %468 = vadd.xlane.f32.xlu0 %v445
    %v469 = vpop.xlane.xlu0 %468
    %470 = vadd.xlane.f32.xlu0 %v446
    %v471 = vpop.xlane.xlu0 %470
    %472 = vadd.xlane.f32.xlu0 %v447
    %v473 = vpop.xlane.xlu0 %472
    %474 = vadd.xlane.f32.xlu0 %v448
    %v475 = vpop.xlane.xlu0 %474
    %476 = vadd.xlane.f32.xlu0 %v449
    %v477 = vpop.xlane.xlu0 %476
    %v478 = vmax.f32 %v451, 1e-24
    %v479 = vmax.f32 %v453, 1e-24
    %v480 = vmax.f32 %v455, 1e-24
    %v481 = vmax.f32 %v457, 1e-24
    %v482 = vmax.f32 %v459, 1e-24
    %v483 = vmax.f32 %v461, 1e-24
    %v484 = vmax.f32 %v463, 1e-24
    %v485 = vmax.f32 %v465, 1e-24
    %v486 = vmax.f32 %v467, 1e-24
    %v487 = vmax.f32 %v469, 1e-24
    %v488 = vmax.f32 %v471, 1e-24
    %v489 = vmax.f32 %v473, 1e-24
    %v490 = vmax.f32 %v475, 1e-24
    %v491 = vmax.f32 %v477, 1e-24
    %v492 = vrsqrt.pop %v478
    %v493 = vrsqrt.pop %v479
    %v494 = vrsqrt.pop %v480
    %v495 = vrsqrt.pop %v481
    %v496 = vrsqrt.pop %v482
    %v497 = vrsqrt.pop %v483
    %v498 = vrsqrt.pop %v484
    %v499 = vrsqrt.pop %v485
    %v500 = vrsqrt.pop %v486
    %v501 = vrsqrt.pop %v487
    %v502 = vrsqrt.pop %v488
    %v503 = vrsqrt.pop %v489
    %v504 = vrsqrt.pop %v490
    %v505 = vrsqrt.pop %v491
    %v506 = vmul.f32 %v368, %v492
    %v507 = vmul.f32 %v372, %v493
    %v508 = vmul.f32 %v378, %v494
    %v509 = vmul.f32 %v382, %v495
    %v510 = vmul.f32 %v388, %v496
    %v511 = vmul.f32 %v392, %v497
    %v512 = vmul.f32 %v398, %v498
    %v513 = vmul.f32 %v402, %v499
    %v514 = vmul.f32 %v408, %v500
    %v515 = vmul.f32 %v412, %v501
    %v516 = vmul.f32 %v418, %v502
    %v517 = vmul.f32 %v422, %v503
    %v518 = vmul.f32 %v428, %v504
    %v519 = vmul.f32 %v432, %v505
    %520 = vst [vmem:[#allocation7] sm:$0xff] %v506
    %521 = vst [vmem:[#allocation7 + $0x8] sm:$0xff] %v507
    %522 = vst [vmem:[#allocation7 + $0x10] sm:$0xff] %v508
    %523 = vst [vmem:[#allocation7 + $0x18] sm:$0xff] %v509
    %524 = vst [vmem:[#allocation7 + $0x20] sm:$0xff] %v510
    %525 = vst [vmem:[#allocation7 + $0x28] sm:$0xff] %v511
    %526 = vst [vmem:[#allocation7 + $0x30] sm:$0xff] %v512
    %527 = vst [vmem:[#allocation7 + $0x38] sm:$0xff] %v513
    %528 = vst [vmem:[#allocation7 + $0x40] sm:$0xff] %v514
    %529 = vst [vmem:[#allocation7 + $0x48] sm:$0xff] %v515
    %530 = vst [vmem:[#allocation7 + $0x50] sm:$0xff] %v516
    %531 = vst [vmem:[#allocation7 + $0x58] sm:$0xff] %v517
    %532 = vst [vmem:[#allocation7 + $0x60] sm:$0xff] %v518
    %533 = vst [vmem:[#allocation7 + $0x68] sm:$0xff] %v519
    %vm534 = vcmask 7168
    %535 = vst.msk [vmem:[#allocation8] sm:$0xff] %vm534, %v370
    %536 = vst.msk [vmem:[#allocation8 + $0x8] sm:$0xff] %vm534, %v374
    %537 = vst.msk [vmem:[#allocation8 + $0x10] sm:$0xff] %vm534, %v380
    %538 = vst.msk [vmem:[#allocation8 + $0x18] sm:$0xff] %vm534, %v384
    %539 = vst.msk [vmem:[#allocation8 + $0x20] sm:$0xff] %vm534, %v390
    %540 = vst.msk [vmem:[#allocation8 + $0x28] sm:$0xff] %vm534, %v394
    %541 = vst.msk [vmem:[#allocation8 + $0x30] sm:$0xff] %vm534, %v400
    %542 = vst.msk [vmem:[#allocation8 + $0x38] sm:$0xff] %vm534, %v404
    %543 = vst.msk [vmem:[#allocation8 + $0x40] sm:$0xff] %vm534, %v410
    %544 = vst.msk [vmem:[#allocation8 + $0x48] sm:$0xff] %vm534, %v414
    %545 = vst.msk [vmem:[#allocation8 + $0x50] sm:$0xff] %vm534, %v420
    %546 = vst.msk [vmem:[#allocation8 + $0x58] sm:$0xff] %vm534, %v424
    %547 = vst.msk [vmem:[#allocation8 + $0x60] sm:$0xff] %vm534, %v430
    %548 = vst.msk [vmem:[#allocation8 + $0x68] sm:$0xff] %vm534, %v434
    // Predicated region
    $region22: #{tpu_custom_call.1} parent=1 // pred_check
      _
    $region23: #{tpu_custom_call.1} parent=1 // pred_check_branch
      %550 = sbr.rel (0) target = $region25
    $region24: #{tpu_custom_call.1} parent=1 // pred_region
      %s552 = ssub.s32 1792, 1664
      %553 = vsyncadd [#allocation4], %s552
      %s554 = sshll.u32 [#allocation7], 4
      %s555 = int_to_ptr.vmem [resolvable:$true] %s554
      %560 = dma.vmem_to_hbm [thread:$0]  %s555, 1664, %s3, [#allocation4], 128, 128, 8
    $region25: #{tpu_custom_call.1} parent=1 // pred_fallthru
      _
    // Predicated region
    $region26: #{tpu_custom_call.1} parent=1 // pred_check
      _
    $region27: #{tpu_custom_call.1} parent=1 // pred_check_branch
      %562 = sbr.rel (0) target = $region29
    $region28: #{tpu_custom_call.1} parent=1 // pred_region
      // Predicated region
      $region30: #{tpu_custom_call.1} parent=28 // pred_check
        _
      $region31: #{tpu_custom_call.1} parent=28 // pred_check_branch
        %564 = sbr.rel (0) target = $region33
      $region32: #{tpu_custom_call.1} parent=28 // pred_region
        // Predicated region
        $region34: #{tpu_custom_call.1} parent=32 // pred_check
          _
        $region35: #{tpu_custom_call.1} parent=32 // pred_check_branch
          %566 = sbr.rel (0) target = $region37
        $region36: #{tpu_custom_call.1} parent=32 // pred_region
          // Predicated region
          $region49: #{tpu_custom_call.1} parent=36 // pred_check
            _
          $region50: #{tpu_custom_call.1} parent=36 // pred_check_branch
            %605 = sbr.rel (0) target = $region52
          $region51: #{tpu_custom_call.1} parent=36 // pred_region
            loop: start=0, step=1, limit=1
            $region53: #{tpu_custom_call.1} parent=51 // loop_pre_header
              _
            $region54: #{tpu_custom_call.1} parent=51 // loop_header
              %s607 = sphi 0, %s611
              %p608 = scmp.ge.s32.totalorder %s607, 1
              %s612 = sphi [#allocation8], [#allocation8]
              %s613 = sphi %s4, %s4
            $region55: #{tpu_custom_call.1} parent=51 // loop_header_branch
              %610 = sbr.rel (%p608) target = $region59
            $region56: #{tpu_custom_call.1} parent=51 // loop_body
              %v614 = vld [vmem:[%s612] sm:$0xff]
              %615 = vst [vmem:[%s613] sm:$0xff] %v614
              %v616 = vld [vmem:[%s612 + $0x8] sm:$0xff]
              %617 = vst [vmem:[%s613 + $0x8] sm:$0xff] %v616
              %v618 = vld [vmem:[%s612 + $0x10] sm:$0xff]
              %619 = vst [vmem:[%s613 + $0x10] sm:$0xff] %v618
              %v620 = vld [vmem:[%s612 + $0x18] sm:$0xff]
              %621 = vst [vmem:[%s613 + $0x18] sm:$0xff] %v620
              %v622 = vld [vmem:[%s612 + $0x20] sm:$0xff]
              %623 = vst [vmem:[%s613 + $0x20] sm:$0xff] %v622
              %v624 = vld [vmem:[%s612 + $0x28] sm:$0xff]
              %625 = vst [vmem:[%s613 + $0x28] sm:$0xff] %v624
              %v626 = vld [vmem:[%s612 + $0x30] sm:$0xff]
              %627 = vst [vmem:[%s613 + $0x30] sm:$0xff] %v626
              %v628 = vld [vmem:[%s612 + $0x38] sm:$0xff]
              %629 = vst [vmem:[%s613 + $0x38] sm:$0xff] %v628
              %v630 = vld [vmem:[%s612 + $0x40] sm:$0xff]
              %631 = vst [vmem:[%s613 + $0x40] sm:$0xff] %v630
              %v632 = vld [vmem:[%s612 + $0x48] sm:$0xff]
              %633 = vst [vmem:[%s613 + $0x48] sm:$0xff] %v632
              %v634 = vld [vmem:[%s612 + $0x50] sm:$0xff]
              %635 = vst [vmem:[%s613 + $0x50] sm:$0xff] %v634
              %v636 = vld [vmem:[%s612 + $0x58] sm:$0xff]
              %637 = vst [vmem:[%s613 + $0x58] sm:$0xff] %v636
              %v638 = vld [vmem:[%s612 + $0x60] sm:$0xff]
              %639 = vst [vmem:[%s613 + $0x60] sm:$0xff] %v638
            $region57: #{tpu_custom_call.1} parent=51 // loop_footer
              %s611 = sadd.s32 1, %s607
            $region58: #{tpu_custom_call.1} parent=51 // loop_footer_branch
              %606 = sbr.rel target = $region54
            $region59: #{tpu_custom_call.1} parent=51 // loop_exit
              _
          $region52: #{tpu_custom_call.1} parent=36 // pred_fallthru
            _
          // Predicated region
          $region60: #{tpu_custom_call.1} parent=36 // pred_check
            _
          $region61: #{tpu_custom_call.1} parent=36 // pred_check_branch
            %641 = sbr.rel target = $region63
          $region62: #{tpu_custom_call.1} parent=36 // pred_region
            _
          $region63: #{tpu_custom_call.1} parent=36 // pred_fallthru
            _
        $region37: #{tpu_custom_call.1} parent=32 // pred_fallthru
          _
        // Predicated region
        $region38: #{tpu_custom_call.1} parent=32 // pred_check
          _
        $region39: #{tpu_custom_call.1} parent=32 // pred_check_branch
          %568 = sbr.rel target = $region41
        $region40: #{tpu_custom_call.1} parent=32 // pred_region
          loop: start=0, step=1, limit=1
          $region42: #{tpu_custom_call.1} parent=40 // loop_pre_header
            _
          $region43: #{tpu_custom_call.1} parent=40 // loop_header
            %s571 = sphi 0, %s575
            %p572 = scmp.ge.s32.totalorder %s571, 1
            %s576 = sphi [#allocation8], [#allocation8]
            %s577 = sphi %s4, %s4
          $region44: #{tpu_custom_call.1} parent=40 // loop_header_branch
            %574 = sbr.rel (%p572) target = $region48
          $region45: #{tpu_custom_call.1} parent=40 // loop_body
            %v578 = vld [vmem:[%s576] sm:$0xff]
            %579 = vst [vmem:[%s577] sm:$0xff] %v578
            %v580 = vld [vmem:[%s576 + $0x8] sm:$0xff]
            %581 = vst [vmem:[%s577 + $0x8] sm:$0xff] %v580
            %v582 = vld [vmem:[%s576 + $0x10] sm:$0xff]
            %583 = vst [vmem:[%s577 + $0x10] sm:$0xff] %v582
            %v584 = vld [vmem:[%s576 + $0x18] sm:$0xff]
            %585 = vst [vmem:[%s577 + $0x18] sm:$0xff] %v584
            %v586 = vld [vmem:[%s576 + $0x20] sm:$0xff]
            %587 = vst [vmem:[%s577 + $0x20] sm:$0xff] %v586
            %v588 = vld [vmem:[%s576 + $0x28] sm:$0xff]
            %589 = vst [vmem:[%s577 + $0x28] sm:$0xff] %v588
            %v590 = vld [vmem:[%s576 + $0x30] sm:$0xff]
            %591 = vst [vmem:[%s577 + $0x30] sm:$0xff] %v590
            %v592 = vld [vmem:[%s576 + $0x38] sm:$0xff]
            %593 = vst [vmem:[%s577 + $0x38] sm:$0xff] %v592
            %v594 = vld [vmem:[%s576 + $0x40] sm:$0xff]
            %595 = vst [vmem:[%s577 + $0x40] sm:$0xff] %v594
            %v596 = vld [vmem:[%s576 + $0x48] sm:$0xff]
            %597 = vst [vmem:[%s577 + $0x48] sm:$0xff] %v596
            %v598 = vld [vmem:[%s576 + $0x50] sm:$0xff]
            %599 = vst [vmem:[%s577 + $0x50] sm:$0xff] %v598
            %v600 = vld [vmem:[%s576 + $0x58] sm:$0xff]
            %601 = vst [vmem:[%s577 + $0x58] sm:$0xff] %v600
            %v602 = vld [vmem:[%s576 + $0x60] sm:$0xff]
            %603 = vst [vmem:[%s577 + $0x60] sm:$0xff] %v602
          $region46: #{tpu_custom_call.1} parent=40 // loop_footer
            %s575 = sadd.s32 1, %s571
          $region47: #{tpu_custom_call.1} parent=40 // loop_footer_branch
            %570 = sbr.rel target = $region43
          $region48: #{tpu_custom_call.1} parent=40 // loop_exit
            _
        $region41: #{tpu_custom_call.1} parent=32 // pred_fallthru
          _
      $region33: #{tpu_custom_call.1} parent=28 // pred_fallthru
        _
      %642 = vnop
    $region29: #{tpu_custom_call.1} parent=1 // pred_fallthru
      _
    // Predicated region
    $region64: #{tpu_custom_call.1} parent=1 // pred_check
      _
    $region65: #{tpu_custom_call.1} parent=1 // pred_check_branch
      %644 = sbr.rel (0) target = $region67
    $region66: #{tpu_custom_call.1} parent=1 // pred_region
      %645 = dma.done [#allocation4], 1792
    $region67: #{tpu_custom_call.1} parent=1 // pred_fallthru
      _
    // Predicated region
    $region68: #{tpu_custom_call.1} parent=1 // pred_check
      _
    $region69: #{tpu_custom_call.1} parent=1 // pred_check_branch
      %647 = sbr.rel (0) target = $region71
    $region70: #{tpu_custom_call.1} parent=1 // pred_region
      _
    $region71: #{tpu_custom_call.1} parent=1 // pred_fallthru
      _
    %648 = vsyncpa [#allocation3], 1
    %649 = vsyncpa [#allocation6], 1
    %650 = vsyncpa [#allocation4], 1

</llo_original>
